<compile_context>
chip_gen: v5e
topology: v5e:2x2
jax: 0.10.0
libtpu: 0.0.40
codegen_flags: <defaults>
</compile_context>

<pallas_src>
import jax
import jax.numpy as jnp
from jax.experimental import pallas as pl
from jax.experimental.pallas import tpu as pltpu


def critic_kernel(s_ref, a_ref, w1s_ref, w1a_ref, b1_ref, w2_ref, b2_ref,
                  w3_ref, b3_ref, out_ref):
    # Layer 1: split first matmul replaces the wrapper-side concat.
    h1 = (jnp.dot(s_ref[...], w1s_ref[...], preferred_element_type=jnp.float32)
          + jnp.dot(a_ref[...], w1a_ref[...], preferred_element_type=jnp.float32)
          + b1_ref[...])
    h1 = jnp.maximum(h1, 0.0)

    # Layer 2: 128x128 MXU matmul, f32 accumulation.
    h2 = jnp.dot(h1, w2_ref[...], preferred_element_type=jnp.float32) + b2_ref[...]
    h2 = jnp.maximum(h2, 0.0)

    # Layer 3 (128 -> 1): VPU multiply + XLU lane-reduce instead of an N=1 MXU
    # matmul; b3 is a scalar read from SMEM.
    v = jnp.sum(h2 * w3_ref[...], axis=-1, keepdims=True) + b3_ref[0, 0]
    out_ref[...] = v.astype(out_ref.dtype)


def critic_forward(state, action, params, *, block_b=1024):
    """q = Critic(state, action); state: (B, Ds) f32, action: (B, Da) f32 -> (B, 1)."""
    w1s, w1a, b1, w2, b2, w3, b3 = params
    B, ds = state.shape
    da = action.shape[1]

    # Batch tiling: one tile for small B (rounded to a multiple of 8 sublanes),
    # otherwise block_b-row tiles.  Pad the batch and slice off at the end.
    if B <= block_b:
        TB = ((B + 7) // 8) * 8
    else:
        TB = block_b
    B_pad = pl.cdiv(B, TB) * TB
    if B_pad != B:
        state = jnp.pad(state, ((0, B_pad - B), (0, 0)))
        action = jnp.pad(action, ((0, B_pad - B), (0, 0)))
    grid = (B_pad // TB,)

    act_tile = lambda d: pl.BlockSpec((TB, d), lambda i: (i, 0))
    # Constant index_map -> fetched once, stays VMEM-resident across all tiles.
    resident = lambda a: pl.BlockSpec(a.shape, lambda i: (0, 0))

    out = pl.pallas_call(
        critic_kernel,
        out_shape=jax.ShapeDtypeStruct((B_pad, 1), jnp.float32),
        grid=grid,
        in_specs=[
            act_tile(ds),            # state tile   (pipelined)
            act_tile(da),            # action tile  (pipelined)
            resident(w1s), resident(w1a), resident(b1),
            resident(w2), resident(b2), resident(w3),
            pl.BlockSpec(memory_space=pltpu.MemorySpace.SMEM),   # b3 scalar
        ],
        out_specs=pl.BlockSpec((TB, 1), lambda i: (i, 0)),
        compiler_params=pltpu.CompilerParams(
            dimension_semantics=("parallel",),
        ),
    )(state, action, w1s, w1a, b1, w2, b2, w3, b3)
    return out[:B]


def init_critic_params(key, state_dim, action_dim, hidden=128, init_w=0.003):
    """Mirror PyTorch defaults: uniform +/-1/sqrt(fan_in) for hidden layers,
    uniform +/-init_w for the final layer (as in the Critic module)."""
    in_dim = state_dim + action_dim
    k1, k2, k3, k4, k5, k6 = jax.random.split(key, 6)
    lim1 = 1.0 / jnp.sqrt(in_dim)
    lim2 = 1.0 / jnp.sqrt(hidden)
    w1 = jax.random.uniform(k1, (in_dim, hidden), jnp.float32, -lim1, lim1)
    w1s, w1a = w1[:state_dim], w1[state_dim:]          # split for concat-free layer 1
    b1 = jax.random.uniform(k2, (1, hidden), jnp.float32, -lim1, lim1)
    w2 = jax.random.uniform(k3, (hidden, hidden), jnp.float32, -lim2, lim2)
    b2 = jax.random.uniform(k4, (1, hidden), jnp.float32, -lim2, lim2)
    w3 = jax.random.uniform(k5, (1, hidden), jnp.float32, -init_w, init_w)  # row layout
    b3 = jax.random.uniform(k6, (1, 1), jnp.float32, -init_w, init_w)       # SMEM scalar
    return (w1s, w1a, b1, w2, b2, w3, b3)


def critic_ref(state, action, params):
    """Pure-JAX reference with the same parameters / math (matches the PyTorch forward)."""
    w1s, w1a, b1, w2, b2, w3, b3 = params
    h1 = jnp.maximum(state @ w1s + action @ w1a + b1, 0.0)   # == cat(s,a) @ W1 + b1
    h2 = jnp.maximum(h1 @ w2 + b2, 0.0)
    return h2 @ w3.T + b3


if __name__ == "__main__":
    key = jax.random.PRNGKey(0)
    k_s1, k_a1, k_s2, k_a2, k_p = jax.random.split(key, 5)

    state_dim, action_dim = 6, 2          # Critic(in_dim=8)
    params = init_critic_params(k_p, state_dim, action_dim)

    # Case 1: small batch, single tile (typical RL critic call).
    B1 = 8
    s1 = jax.random.normal(k_s1, (B1, state_dim), jnp.float32)
    a1 = jax.random.normal(k_a1, (B1, action_dim), jnp.float32)
    v1 = jax.block_until_ready(critic_forward(s1, a1, params))
    assert v1.shape == (B1, 1)
    assert jnp.allclose(v1, critic_ref(s1, a1, params), atol=1e-5, rtol=1e-5)

    # Case 2: larger batch exercising the batch grid, VMEM-resident weights,
    # and padding (B=40 with 16-row tiles -> grid of 3, 8 padded rows).
    B2 = 40
    s2 = jax.random.normal(k_s2, (B2, state_dim), jnp.float32)
    a2 = jax.random.normal(k_a2, (B2, action_dim), jnp.float32)
    v2 = jax.block_until_ready(critic_forward(s2, a2, params, block_b=16))
    assert v2.shape == (B2, 1)
    assert jnp.allclose(v2, critic_ref(s2, a2, params), atol=1e-5, rtol=1e-5)

    print("KERNEL_OK")
</pallas_src>

<mosaic_0001>
module attributes {stable_mosaic.version = 11 : i64} {
  func.func @critic_kernel(%arg0: i32, %arg1: memref<8x6xf32, #tpu.memory_space<vmem>>, %arg2: memref<8x2xf32, #tpu.memory_space<vmem>>, %arg3: memref<6x128xf32, #tpu.memory_space<vmem>>, %arg4: memref<2x128xf32, #tpu.memory_space<vmem>>, %arg5: memref<1x128xf32, #tpu.memory_space<vmem>>, %arg6: memref<128x128xf32, #tpu.memory_space<vmem>>, %arg7: memref<1x128xf32, #tpu.memory_space<vmem>>, %arg8: memref<1x128xf32, #tpu.memory_space<vmem>>, %arg9: memref<1x1xf32, #tpu.memory_space<smem>>, %arg10: memref<8x1xf32, #tpu.memory_space<vmem>>) attributes {dimension_semantics = [#tpu.dimension_semantics<parallel>], iteration_bounds = array<i64: 1>, scalar_prefetch = 0 : i64, scratch_operands = 0 : i64, tpu.core_type = #tpu.core_type<tc>, window_params = [{transform_indices = @transform_0, window_bounds = array<i64: 8, 6>}, {transform_indices = @transform_1, window_bounds = array<i64: 8, 2>}, {pipeline_mode = #tpu.pipeline_mode<synchronous>, transform_indices = @transform_2, window_bounds = array<i64: 6, 128>}, {pipeline_mode = #tpu.pipeline_mode<synchronous>, transform_indices = @transform_3, window_bounds = array<i64: 2, 128>}, {pipeline_mode = #tpu.pipeline_mode<synchronous>, transform_indices = @transform_4, window_bounds = array<i64: 1, 128>}, {pipeline_mode = #tpu.pipeline_mode<synchronous>, transform_indices = @transform_5, window_bounds = array<i64: 128, 128>}, {pipeline_mode = #tpu.pipeline_mode<synchronous>, transform_indices = @transform_6, window_bounds = array<i64: 1, 128>}, {pipeline_mode = #tpu.pipeline_mode<synchronous>, transform_indices = @transform_7, window_bounds = array<i64: 1, 128>}, {transform_indices = @transform_8, window_bounds = array<i64: 1, 1>}, {transform_indices = @transform_9, window_bounds = array<i64: 8, 1>}]} {
    %c0 = arith.constant 0 : index
    %c0_0 = arith.constant 0 : index
    %0 = vector.load %arg1[%c0, %c0_0] : memref<8x6xf32, #tpu.memory_space<vmem>>, vector<8x6xf32>
    %c0_1 = arith.constant 0 : index
    %c0_2 = arith.constant 0 : index
    %1 = vector.load %arg3[%c0_1, %c0_2] : memref<6x128xf32, #tpu.memory_space<vmem>>, vector<6x128xf32>
    %cst = arith.constant dense<0.000000e+00> : vector<8x128xf32>
    %2 = tpu.matmul %0, %1, %cst {dimension_numbers = #tpu.dot_dimension_numbers<[1], [0], [0], [1], [0, 0, 1, 1], [], []>} : vector<8x6xf32>, vector<6x128xf32>, vector<8x128xf32> -> vector<8x128xf32>
    %c0_3 = arith.constant 0 : index
    %c0_4 = arith.constant 0 : index
    %3 = vector.load %arg2[%c0_3, %c0_4] : memref<8x2xf32, #tpu.memory_space<vmem>>, vector<8x2xf32>
    %c0_5 = arith.constant 0 : index
    %c0_6 = arith.constant 0 : index
    %4 = vector.load %arg4[%c0_5, %c0_6] : memref<2x128xf32, #tpu.memory_space<vmem>>, vector<2x128xf32>
    %cst_7 = arith.constant dense<0.000000e+00> : vector<8x128xf32>
    %5 = tpu.matmul %3, %4, %cst_7 {dimension_numbers = #tpu.dot_dimension_numbers<[1], [0], [0], [1], [0, 0, 1, 1], [], []>} : vector<8x2xf32>, vector<2x128xf32>, vector<8x128xf32> -> vector<8x128xf32>
    %6 = arith.addf %2, %5 : vector<8x128xf32>
    %c0_8 = arith.constant 0 : index
    %c0_9 = arith.constant 0 : index
    %7 = vector.load %arg5[%c0_8, %c0_9] : memref<1x128xf32, #tpu.memory_space<vmem>>, vector<1x128xf32>
    %8 = vector.broadcast %7 : vector<1x128xf32> to vector<8x128xf32>
    %9 = arith.addf %6, %8 : vector<8x128xf32>
    %cst_10 = arith.constant 0.000000e+00 : f32
    %10 = vector.broadcast %cst_10 : f32 to vector<8x128xf32>
    %11 = arith.maximumf %9, %10 : vector<8x128xf32>
    %c0_11 = arith.constant 0 : index
    %c0_12 = arith.constant 0 : index
    %12 = vector.load %arg6[%c0_11, %c0_12] : memref<128x128xf32, #tpu.memory_space<vmem>>, vector<128x128xf32>
    %cst_13 = arith.constant dense<0.000000e+00> : vector<8x128xf32>
    %13 = tpu.matmul %11, %12, %cst_13 {dimension_numbers = #tpu.dot_dimension_numbers<[1], [0], [0], [1], [0, 0, 1, 1], [], []>} : vector<8x128xf32>, vector<128x128xf32>, vector<8x128xf32> -> vector<8x128xf32>
    %c0_14 = arith.constant 0 : index
    %c0_15 = arith.constant 0 : index
    %14 = vector.load %arg7[%c0_14, %c0_15] : memref<1x128xf32, #tpu.memory_space<vmem>>, vector<1x128xf32>
    %15 = vector.broadcast %14 : vector<1x128xf32> to vector<8x128xf32>
    %16 = arith.addf %13, %15 : vector<8x128xf32>
    %cst_16 = arith.constant 0.000000e+00 : f32
    %17 = vector.broadcast %cst_16 : f32 to vector<8x128xf32>
    %18 = arith.maximumf %16, %17 : vector<8x128xf32>
    %c0_17 = arith.constant 0 : index
    %c0_18 = arith.constant 0 : index
    %19 = vector.load %arg8[%c0_17, %c0_18] : memref<1x128xf32, #tpu.memory_space<vmem>>, vector<1x128xf32>
    %20 = vector.broadcast %19 : vector<1x128xf32> to vector<8x128xf32>
    %21 = arith.mulf %18, %20 : vector<8x128xf32>
    %cst_19 = arith.constant dense<0.000000e+00> : vector<8xf32>
    %22 = vector.multi_reduction <add>, %21, %cst_19 [1] : vector<8x128xf32> to vector<8xf32>
    %23 = vector.shape_cast %22 : vector<8xf32> to vector<8x1xf32>
    %c0_20 = arith.constant 0 : index
    %c0_21 = arith.constant 0 : index
    %24 = memref.load %arg9[%c0_20, %c0_21] : memref<1x1xf32, #tpu.memory_space<smem>>
    %25 = vector.broadcast %24 : f32 to vector<8x1xf32>
    %26 = arith.addf %23, %25 : vector<8x1xf32>
    %c0_22 = arith.constant 0 : index
    %c0_23 = arith.constant 0 : index
    %27 = vector.load %arg10[%c0_22, %c0_23] : memref<8x1xf32, #tpu.memory_space<vmem>>, vector<8x1xf32>
    tpu.vector_store %arg10[%c0_22, %c0_23], %26 {strides = array<i32>} : memref<8x1xf32, #tpu.memory_space<vmem>>, vector<8x1xf32>,
    return
  }
  func.func @transform_0(%arg0: i32) -> (i32, i32) {
    %c0_i32 = arith.constant 0 : i32
    %c0_i32_0 = arith.constant 0 : i32
    return %arg0, %c0_i32 : i32, i32
  }
  func.func @transform_1(%arg0: i32) -> (i32, i32) {
    %c0_i32 = arith.constant 0 : i32
    %c0_i32_0 = arith.constant 0 : i32
    return %arg0, %c0_i32 : i32, i32
  }
  func.func @transform_2(%arg0: i32) -> (i32, i32) {
    %c0_i32 = arith.constant 0 : i32
    %c0_i32_0 = arith.constant 0 : i32
    %c0_i32_1 = arith.constant 0 : i32
    return %c0_i32, %c0_i32_0 : i32, i32
  }
  func.func @transform_3(%arg0: i32) -> (i32, i32) {
    %c0_i32 = arith.constant 0 : i32
    %c0_i32_0 = arith.constant 0 : i32
    %c0_i32_1 = arith.constant 0 : i32
    return %c0_i32, %c0_i32_0 : i32, i32
  }
  func.func @transform_4(%arg0: i32) -> (i32, i32) {
    %c0_i32 = arith.constant 0 : i32
    %c0_i32_0 = arith.constant 0 : i32
    %c0_i32_1 = arith.constant 0 : i32
    return %c0_i32, %c0_i32_0 : i32, i32
  }
  func.func @transform_5(%arg0: i32) -> (i32, i32) {
    %c0_i32 = arith.constant 0 : i32
    %c0_i32_0 = arith.constant 0 : i32
    %c0_i32_1 = arith.constant 0 : i32
    return %c0_i32, %c0_i32_0 : i32, i32
  }
  func.func @transform_6(%arg0: i32) -> (i32, i32) {
    %c0_i32 = arith.constant 0 : i32
    %c0_i32_0 = arith.constant 0 : i32
    %c0_i32_1 = arith.constant 0 : i32
    return %c0_i32, %c0_i32_0 : i32, i32
  }
  func.func @transform_7(%arg0: i32) -> (i32, i32) {
    %c0_i32 = arith.constant 0 : i32
    %c0_i32_0 = arith.constant 0 : i32
    %c0_i32_1 = arith.constant 0 : i32
    return %c0_i32, %c0_i32_0 : i32, i32
  }
  func.func @transform_8(%arg0: i32) -> (i32, i32) {
    %c0_i32 = arith.constant 0 : i32
    %c0_i32_0 = arith.constant 0 : i32
    %c0_i32_1 = arith.constant 0 : i32
    return %c0_i32, %c0_i32_0 : i32, i32
  }
  func.func @transform_9(%arg0: i32) -> (i32, i32) {
    %c0_i32 = arith.constant 0 : i32
    %c0_i32_0 = arith.constant 0 : i32
    return %arg0, %c0_i32 : i32, i32
  }
}

</mosaic_0001>

<llo_original>
// kernel: tpu_custom_call.1
$region0: #{tpu_custom_call.1}
  #allocation0 [shape = 'u32[]', space=smem, size = 0x4, offset = 0x4, fixed_abs, tag = 'smem constant byte address 0x4 - core index']
  #allocation1 [shape = 'u32[72,128]{1,0:T(1,128)}', space=vmem, size = 0x9000, scoped, tag = 'internal scratch']
  #allocation2 [shape = 'f32[1,1]{1,0:T(1,128)S(6)}', space=smem, size = 0x200, scoped, tag = 'scoped memory for tpu_custom_call.1']
  %s0 = inlined_call_operand.vmem [shape: f32[8,6], index: 0, kind: input, shape index: {}]
  %s1 = inlined_call_operand.vmem [shape: f32[8,2], index: 1, kind: input, shape index: {}]
  %s2 = inlined_call_operand.hbm [shape: f32[6,128], index: 2, kind: input, shape index: {}]
  %s3 = inlined_call_operand.vmem [shape: f32[2,128], index: 3, kind: input, shape index: {}]
  %s4 = inlined_call_operand.vmem [shape: f32[1,128], index: 4, kind: input, shape index: {}]
  %s5 = inlined_call_operand.hbm [shape: f32[128,128], index: 5, kind: input, shape index: {}]
  %s6 = inlined_call_operand.vmem [shape: f32[1,128], index: 6, kind: input, shape index: {}]
  %s7 = inlined_call_operand.vmem [shape: f32[1,128], index: 7, kind: input, shape index: {}]
  %s8 = inlined_call_operand.<no memory space> [shape: f32[1,1], index: 8, kind: input, shape index: {}]
  %s9 = inlined_call_operand.vmem [shape: f32[8,1], index: 9, kind: output, shape index: {}]
  %s10 = sld [smem:[#allocation0]]
  $region54: #{tpu_custom_call.1} parent=0
    _
  %s12 = ssub.s32 1, %s10
  %s13 = scalar_select 0, %s12, %s10
  %14 = sst [smem:[#allocation2]] %s8
  $region1: #{tpu_custom_call.1} parent=0
    #allocation3 [shape = 'u8[4096]{0}', space=vmem, size = 0x1000, scoped, tag = 'input window, operand 2, single buffered']
    #allocation4 [shape = 's32[1]{0}', space=sflag, size = 0x4, scoped, tag = 'scoped memory for tpu_custom_call.1']
    #allocation5 [shape = 'u8[65536]{0}', space=vmem, size = 0x10000, scoped, tag = 'input window, operand 5, single buffered']
    #allocation6 [shape = 's32[1]{0}', space=sflag, size = 0x4, scoped, tag = 'scoped memory for tpu_custom_call.1']
    %15 = vsyncpa [#allocation4], 0
    %16 = vsyncpa [#allocation6], 0
    // Predicated region
    $region2: #{tpu_custom_call.1} parent=1 // pred_check
      _
    $region3: #{tpu_custom_call.1} parent=1 // pred_check_branch
      %18 = sbr.rel (0) target = $region5
    $region4: #{tpu_custom_call.1} parent=1 // pred_region
      _
    $region5: #{tpu_custom_call.1} parent=1 // pred_fallthru
      _
    // Predicated region
    $region6: #{tpu_custom_call.1} parent=1 // pred_check
      _
    $region7: #{tpu_custom_call.1} parent=1 // pred_check_branch
      %20 = sbr.rel (0) target = $region9
    $region8: #{tpu_custom_call.1} parent=1 // pred_region
      _
    $region9: #{tpu_custom_call.1} parent=1 // pred_fallthru
      _
    // Predicated region
    $region10: #{tpu_custom_call.1} parent=1 // pred_check
      _
    $region11: #{tpu_custom_call.1} parent=1 // pred_check_branch
      %22 = sbr.rel (0) target = $region13
    $region12: #{tpu_custom_call.1} parent=1 // pred_region
      %24 = vsyncadd [#allocation4], 0
      %s26 = sshll.u32 %s2, 4
      %s27 = int_to_ptr.hbm [resolvable:$true] %s26
      %s28 = sshll.u32 [#allocation3], 4
      %s29 = int_to_ptr.vmem [resolvable:$true] %s28
      %31 = dma.hbm_to_vmem [thread:$0]  %s27, 128, %s29, [#allocation4]
    $region13: #{tpu_custom_call.1} parent=1 // pred_fallthru
      _
    // Predicated region
    $region14: #{tpu_custom_call.1} parent=1 // pred_check
      _
    $region15: #{tpu_custom_call.1} parent=1 // pred_check_branch
      %33 = sbr.rel (0) target = $region17
    $region16: #{tpu_custom_call.1} parent=1 // pred_region
      _
    $region17: #{tpu_custom_call.1} parent=1 // pred_fallthru
      _
    // Predicated region
    $region18: #{tpu_custom_call.1} parent=1 // pred_check
      _
    $region19: #{tpu_custom_call.1} parent=1 // pred_check_branch
      %35 = sbr.rel (0) target = $region21
    $region20: #{tpu_custom_call.1} parent=1 // pred_region
      _
    $region21: #{tpu_custom_call.1} parent=1 // pred_fallthru
      _
    // Predicated region
    $region22: #{tpu_custom_call.1} parent=1 // pred_check
      _
    $region23: #{tpu_custom_call.1} parent=1 // pred_check_branch
      %37 = sbr.rel (0) target = $region25
    $region24: #{tpu_custom_call.1} parent=1 // pred_region
      %39 = vsyncadd [#allocation6], 0
      %s40 = sshll.u32 %s5, 4
      %s41 = int_to_ptr.hbm [resolvable:$true] %s40
      %s42 = sshll.u32 [#allocation5], 4
      %s43 = int_to_ptr.vmem [resolvable:$true] %s42
      %48 = dma.hbm_to_vmem [thread:$0]  %s41, 2048, %s43, [#allocation6], 128, 128, 8
    $region25: #{tpu_custom_call.1} parent=1 // pred_fallthru
      _
    // Predicated region
    $region26: #{tpu_custom_call.1} parent=1 // pred_check
      _
    $region27: #{tpu_custom_call.1} parent=1 // pred_check_branch
      %50 = sbr.rel (0) target = $region29
    $region28: #{tpu_custom_call.1} parent=1 // pred_region
      _
    $region29: #{tpu_custom_call.1} parent=1 // pred_fallthru
      _
    // Predicated region
    $region30: #{tpu_custom_call.1} parent=1 // pred_check
      _
    $region31: #{tpu_custom_call.1} parent=1 // pred_check_branch
      %52 = sbr.rel (0) target = $region33
    $region32: #{tpu_custom_call.1} parent=1 // pred_region
      _
    $region33: #{tpu_custom_call.1} parent=1 // pred_fallthru
      _
    // Predicated region
    $region34: #{tpu_custom_call.1} parent=1 // pred_check
      _
    $region35: #{tpu_custom_call.1} parent=1 // pred_check_branch
      %54 = sbr.rel (0) target = $region37
    $region36: #{tpu_custom_call.1} parent=1 // pred_region
      _
    $region37: #{tpu_custom_call.1} parent=1 // pred_fallthru
      _
    // Predicated region
    $region38: #{tpu_custom_call.1} parent=1 // pred_check
      _
    $region39: #{tpu_custom_call.1} parent=1 // pred_check_branch
      %56 = sbr.rel (0) target = $region41
    $region40: #{tpu_custom_call.1} parent=1 // pred_region
      %58 = dma.done [#allocation4], 128
    $region41: #{tpu_custom_call.1} parent=1 // pred_fallthru
      _
    // Predicated region
    $region42: #{tpu_custom_call.1} parent=1 // pred_check
      _
    $region43: #{tpu_custom_call.1} parent=1 // pred_check_branch
      %60 = sbr.rel (0) target = $region45
    $region44: #{tpu_custom_call.1} parent=1 // pred_region
      %62 = dma.done [#allocation6], 2048
    $region45: #{tpu_custom_call.1} parent=1 // pred_fallthru
      _
    %v63 = vld [vmem:[%s0] sm:$0xff]
    %v64 = vld [vmem:[#allocation3] sm:$0x3f]
    %v65 = vld [vmem:[%s1] sm:$0xff]
    %v66 = vld [vmem:[%s3] sm:$0x3]
    %vm67 = vcmask 15360
    %v69 = vsel %vm67, %v65, 0
    %vm71 = vcmask 1041408
    %v73 = vsel %vm71, %v66, 0
    %75 = vmatpush.msra.mxu0 0.0
    %76 = vmatpush.msra.mxu0 0.0
    %77 = vmatpush.msra.mxu0 0.0
    %78 = vmatpush.msra.mxu0 0.0
    %79 = vmatpush.msra.mxu0 0.0
    %80 = vmatpush.msra.mxu0 0.0
    %81 = vmatpush.msra.mxu0 0.0
    %82 = vmatpush.msra.mxu0 0.0
    %83 = vmatpush.msra.mxu0 0.0
    %84 = vmatpush.msra.mxu0 0.0
    %85 = vmatpush.msra.mxu0 0.0
    %86 = vmatpush.msra.mxu0 0.0
    %87 = vmatpush.msra.mxu0 0.0
    %88 = vmatpush.msra.mxu0 0.0
    %89 = vmatpush.msra.mxu0 0.0
    %90 = vmatpush.msra.mxu0 %v73
    %91 = vmatmul.f32.gmra.mxu0 %v69
    %v92 = vpop.f32.mrf.mxu0
    %v93 = vadd.f32 0.0, %v92
    %94 = vdwg.mxu0
    %vm95 = vcmask 48128
    %v97 = vsel %vm95, %v63, 0
    %vm99 = vcmask 1045504
    %v101 = vsel %vm99, %v64, 0
    %103 = vmatpush.msra.mxu0 0.0
    %104 = vmatpush.msra.mxu0 0.0
    %105 = vmatpush.msra.mxu0 0.0
    %106 = vmatpush.msra.mxu0 0.0
    %107 = vmatpush.msra.mxu0 0.0
    %108 = vmatpush.msra.mxu0 0.0
    %109 = vmatpush.msra.mxu0 0.0
    %110 = vmatpush.msra.mxu0 0.0
    %111 = vmatpush.msra.mxu0 0.0
    %112 = vmatpush.msra.mxu0 0.0
    %113 = vmatpush.msra.mxu0 0.0
    %114 = vmatpush.msra.mxu0 0.0
    %115 = vmatpush.msra.mxu0 0.0
    %116 = vmatpush.msra.mxu0 0.0
    %117 = vmatpush.msra.mxu0 0.0
    %118 = vmatpush.msra.mxu0 %v101
    %119 = vmatmul.f32.gmra.mxu0 %v97
    %v120 = vpop.f32.mrf.mxu0
    %v121 = vadd.f32 %v93, %v120
    %122 = vdwg.mxu0
    %v123 = vld [vmem:[%s4] sm:$0x1]
    %v125 = vperm.slane %v123, 0
    %v127 = vadd.f32 %v121, %v125
    %v128 = vmax.f32 %v127, 0.0
    %v129 = vld [vmem:[#allocation5] sm:$0xff]
    %v130 = vld [vmem:[#allocation5 + $0x8] sm:$0xff]
    %v131 = vld [vmem:[#allocation5 + $0x10] sm:$0xff]
    %v132 = vld [vmem:[#allocation5 + $0x18] sm:$0xff]
    %v133 = vld [vmem:[#allocation5 + $0x20] sm:$0xff]
    %v134 = vld [vmem:[#allocation5 + $0x28] sm:$0xff]
    %v135 = vld [vmem:[#allocation5 + $0x30] sm:$0xff]
    %v136 = vld [vmem:[#allocation5 + $0x38] sm:$0xff]
    %v137 = vld [vmem:[#allocation5 + $0x40] sm:$0xff]
    %v138 = vld [vmem:[#allocation5 + $0x48] sm:$0xff]
    %v139 = vld [vmem:[#allocation5 + $0x50] sm:$0xff]
    %v140 = vld [vmem:[#allocation5 + $0x58] sm:$0xff]
    %v141 = vld [vmem:[#allocation5 + $0x60] sm:$0xff]
    %v142 = vld [vmem:[#allocation5 + $0x68] sm:$0xff]
    %v143 = vld [vmem:[#allocation5 + $0x70] sm:$0xff]
    %v144 = vld [vmem:[#allocation5 + $0x78] sm:$0xff]
    %v145 = vld [vmem:[%s6] sm:$0x1]
    %v147 = vperm.slane %v145, 0
    %149 = vmatpush.msra.mxu0 %v144
    %150 = vmatpush.msra.mxu0 %v143
    %151 = vmatpush.msra.mxu0 %v142
    %152 = vmatpush.msra.mxu0 %v141
    %153 = vmatpush.msra.mxu0 %v140
    %154 = vmatpush.msra.mxu0 %v139
    %155 = vmatpush.msra.mxu0 %v138
    %156 = vmatpush.msra.mxu0 %v137
    %157 = vmatpush.msra.mxu0 %v136
    %158 = vmatpush.msra.mxu0 %v135
    %159 = vmatpush.msra.mxu0 %v134
    %160 = vmatpush.msra.mxu0 %v133
    %161 = vmatpush.msra.mxu0 %v132
    %162 = vmatpush.msra.mxu0 %v131
    %163 = vmatpush.msra.mxu0 %v130
    %164 = vmatpush.msra.mxu0 %v129
    %165 = vmatmul.f32.gmra.mxu0 %v128
    %v166 = vpop.f32.mrf.mxu0
    %v167 = vadd.f32 %v147, %v166
    %168 = vdwg.mxu0
    %v169 = vmax.f32 %v167, 0.0
    %v170 = vld [vmem:[%s7] sm:$0x1]
    %v172 = vperm.slane %v170, 0
    %v174 = vmul.f32 %v169, %v172
    %175 = vadd.xlane.f32.xlu0 %v174
    %v176 = vpop.xlane.xlu0 %175
    %s177 = sld [smem:[#allocation2]]
    %v178 = vstv %s177
    %v179 = vadd.f32 %v176, %v178
    %vm180 = vcmask 7168
    %181 = vst.msk [vmem:[%s9] sm:$0xff] %vm180, %v179
    // Predicated region
    $region46: #{tpu_custom_call.1} parent=1 // pred_check
      _
    $region47: #{tpu_custom_call.1} parent=1 // pred_check_branch
      %183 = sbr.rel (0) target = $region49
    $region48: #{tpu_custom_call.1} parent=1 // pred_region
      _
    $region49: #{tpu_custom_call.1} parent=1 // pred_fallthru
      _
    // Predicated region
    $region50: #{tpu_custom_call.1} parent=1 // pred_check
      _
    $region51: #{tpu_custom_call.1} parent=1 // pred_check_branch
      %185 = sbr.rel (0) target = $region53
    $region52: #{tpu_custom_call.1} parent=1 // pred_region
      _
    $region53: #{tpu_custom_call.1} parent=1 // pred_fallthru
      _
    %186 = vsyncpa [#allocation4], 1
    %187 = vsyncpa [#allocation6], 1

</llo_original>
